<compile_context>
chip_gen: v7x
topology: tpu7x:2x2x1
jax: 0.10.0
libtpu: 0.0.40
codegen_flags: <defaults>
</compile_context>

<pallas_src>
import jax
import jax.numpy as jnp
from jax.experimental import pallas as pl
from jax.experimental.pallas import tpu as pltpu

_LANE = 128
_SUBLANE = 8
_MAX_BATCH_TILE = 512  # 512-row tiles reach ~85%+ of HBM roofline; still safe on v5e


def _round_up(x, m):
    return ((x + m - 1) // m) * m


def _mlp_kernel(s_ref, a_ref, w1s_ref, w1a_ref, b1_ref, w2_ref, b2_ref,
                w3_ref, b3_ref, o_ref):
    """Whole 3-layer MLP on one (tb, *) batch tile; weights stay VMEM-resident."""
    dt = w1s_ref.dtype  # dot-operand dtype (f32 or bf16); accumulation is always f32
    # fc1 with the torch.cat fused: cat([s, a]) @ W1 == s @ W1[:ni] + a @ W1[ni:]
    h1 = (jnp.dot(s_ref[...].astype(dt), w1s_ref[...],
                  preferred_element_type=jnp.float32)
          + jnp.dot(a_ref[...].astype(dt), w1a_ref[...],
                    preferred_element_type=jnp.float32)
          + b1_ref[...])
    h1 = jnp.maximum(h1, 0.0)                       # f32 ReLU (v5e VPU has no bf16)
    h2 = jnp.maximum(
        jnp.dot(h1.astype(dt), w2_ref[...], preferred_element_type=jnp.float32)
        + b2_ref[...], 0.0)
    o_ref[...] = (jnp.dot(h2.astype(dt), w3_ref[...],
                          preferred_element_type=jnp.float32)
                  + b3_ref[...])


def _choose_batch_tile(B):
    if B <= _SUBLANE:
        return B  # single block equal to the full batch dim
    # Aim for >= 2 grid steps so the "parallel" batch axis can use v7x's 2 TCs,
    # but cap the tile (per-step overhead is ~0.35us; v5e guidance: <= 512 rows).
    return min(_MAX_BATCH_TILE, _round_up(pl.cdiv(B, 2), _SUBLANE))


def _vmem_limit_bytes(tb, ni, na, hidden, n_out_p, w_itemsize):
    # Resident weights (ideally single-buffered; the x2 covers the
    # double-buffered fallback) + double-buffered activation/output tiles +
    # f32 intermediates, plus headroom. Floor well above tiny-shape needs,
    # capped at v7x's 64 MiB physical VMEM.
    w_bytes = (ni * hidden + na * hidden + hidden * hidden + hidden * n_out_p) * w_itemsize
    b_bytes = (2 * hidden + n_out_p) * 4
    act_bytes = 2 * tb * (ni + na) * 4
    out_bytes = 2 * tb * n_out_p * 4
    live_bytes = 2 * tb * hidden * 4
    need = 2 * (w_bytes + b_bytes) + act_bytes + out_bytes + live_bytes
    return int(min(64 * (1 << 20), max(16 * (1 << 20), need + (2 << 20))))


def prepare_params(params, num_inputs, dot_dtype=jnp.float32):
    """One-time parameter prep (do NOT call per forward).

    Splits w1 so the torch.cat is fused into the kernel, lane-pads the fc3 head
    only when it is already >= 128 wide, and optionally stores weights in
    `dot_dtype` (e.g. bf16) for the MXU dots; biases and accumulation stay f32.
    """
    w1, b1, w2, b2, w3, b3 = (params[k] for k in ("w1", "b1", "w2", "b2", "w3", "b3"))
    n_out = w3.shape[1]
    if n_out >= _LANE and n_out % _LANE:
        pad = _round_up(n_out, _LANE) - n_out
        w3 = jnp.pad(w3, ((0, 0), (0, pad)))
        b3 = jnp.pad(b3, ((0, 0), (0, pad)))
    # TODO(synk): for hidden_dim where hidden^2 * itemsize approaches v7x's
    # 64 MiB VMEM, add a reduction grid axis over the fc2 hidden dim (f32
    # accumulator scratch + pl.when init/finalize) instead of keeping w2 fully
    # resident.
    return {
        "w1s": w1[:num_inputs].astype(dot_dtype),
        "w1a": w1[num_inputs:].astype(dot_dtype),
        "b1": b1.astype(jnp.float32),
        "w2": w2.astype(dot_dtype),
        "b2": b2.astype(jnp.float32),
        "w3": w3.astype(dot_dtype),
        "b3": b3.astype(jnp.float32),
        "n_out": n_out,
    }


def predictive_model_forward(state, action, prepared):
    """state: (B, num_inputs), action: (B, num_actions) -> (B, n_out)."""
    B, ni = state.shape
    na = action.shape[1]
    hidden = prepared["w2"].shape[0]
    n_out = prepared["n_out"]
    n_out_p = prepared["w3"].shape[1]

    tb = _choose_batch_tile(B)
    grid = (pl.cdiv(B, tb),)
    vmem_limit = _vmem_limit_bytes(tb, ni, na, hidden, n_out_p,
                                   jnp.dtype(prepared["w2"].dtype).itemsize)

    def run(weight_mode):
        kw = {} if weight_mode is None else {"pipeline_mode": weight_mode}

        def resident(arr):
            # Constant index_map -> block stays VMEM-resident across grid steps.
            return pl.BlockSpec(arr.shape, lambda i: (0, 0), **kw)

        return pl.pallas_call(
            _mlp_kernel,
            out_shape=jax.ShapeDtypeStruct((B, n_out_p), jnp.float32),
            grid=grid,
            in_specs=[
                pl.BlockSpec((tb, ni), lambda i: (i, 0)),   # state tile
                pl.BlockSpec((tb, na), lambda i: (i, 0)),   # action tile
                resident(prepared["w1s"]), resident(prepared["w1a"]),
                resident(prepared["b1"]),
                resident(prepared["w2"]), resident(prepared["b2"]),
                resident(prepared["w3"]), resident(prepared["b3"]),
            ],
            # Partial last batch block: garbage rows are masked on this write
            # and never mix into valid rows (dots contract over features only).
            out_specs=pl.BlockSpec((tb, n_out_p), lambda i: (i, 0)),
            compiler_params=pltpu.CompilerParams(
                dimension_semantics=("parallel",),   # batch -> v7x's 2 TCs
                vmem_limit_bytes=vmem_limit),
        )(state, action, prepared["w1s"], prepared["w1a"], prepared["b1"],
          prepared["w2"], prepared["b2"], prepared["w3"], prepared["b3"])

    try:
        out = run(pl.Buffered(1))   # single-buffer the resident weights
    except Exception:               # jax without BlockSpec pipeline_mode support
        out = run(None)

    if n_out_p != n_out:
        out = out[:, :n_out]        # drop lane padding (only when n_out >= 128)
    return out


def _xavier_uniform(key, fan_in, fan_out, gain=1.0):
    bound = gain * jnp.sqrt(6.0 / (fan_in + fan_out))
    return jax.random.uniform(key, (fan_in, fan_out), jnp.float32, -bound, bound)


def init_params(key, num_inputs, num_actions, hidden_dim):
    k1, k2, k3 = jax.random.split(key, 3)
    in_dim = num_inputs + num_actions
    return {
        "w1": _xavier_uniform(k1, in_dim, hidden_dim),
        "b1": jnp.zeros((1, hidden_dim), jnp.float32),
        "w2": _xavier_uniform(k2, hidden_dim, hidden_dim),
        "b2": jnp.zeros((1, hidden_dim), jnp.float32),
        "w3": _xavier_uniform(k3, hidden_dim, num_inputs),
        "b3": jnp.zeros((1, num_inputs), jnp.float32),
    }


if __name__ == "__main__":
    num_inputs, num_actions, hidden_dim, batch = 16, 4, 32, 8

    key = jax.random.PRNGKey(0)
    kp, ks, ka = jax.random.split(key, 3)
    raw_params = init_params(kp, num_inputs, num_actions, hidden_dim)
    # One-time prep (f32 dots here so the small-shape reference check holds to
    # 1e-5; use dot_dtype=jnp.bfloat16 for large hidden_dim on v6e/v7x).
    prepared = prepare_params(raw_params, num_inputs)

    state = jax.random.normal(ks, (batch, num_inputs), jnp.float32)
    action = jax.random.normal(ka, (batch, num_actions), jnp.float32)

    out = predictive_model_forward(state, action, prepared)
    out = jax.block_until_ready(out)

    # Reference in plain JAX (matches the PyTorch forward).
    x = jnp.concatenate([state, action], axis=1)
    h1 = jnp.maximum(x @ raw_params["w1"] + raw_params["b1"], 0.0)
    h2 = jnp.maximum(h1 @ raw_params["w2"] + raw_params["b2"], 0.0)
    ref = h2 @ raw_params["w3"] + raw_params["b3"]
    assert out.shape == (batch, num_inputs)
    assert jnp.allclose(out, ref, atol=1e-5), "mismatch vs reference"

    print("KERNEL_OK")
</pallas_src>

<mosaic_0001>
module attributes {stable_mosaic.version = 11 : i64} {
  func.func @_mlp_kernel(%arg0: i32, %arg1: memref<8x16xf32, #tpu.memory_space<vmem>>, %arg2: memref<8x4xf32, #tpu.memory_space<vmem>>, %arg3: memref<16x32xf32, #tpu.memory_space<vmem>>, %arg4: memref<4x32xf32, #tpu.memory_space<vmem>>, %arg5: memref<1x32xf32, #tpu.memory_space<vmem>>, %arg6: memref<32x32xf32, #tpu.memory_space<vmem>>, %arg7: memref<1x32xf32, #tpu.memory_space<vmem>>, %arg8: memref<32x16xf32, #tpu.memory_space<vmem>>, %arg9: memref<1x16xf32, #tpu.memory_space<vmem>>, %arg10: memref<8x16xf32, #tpu.memory_space<vmem>>) attributes {dimension_semantics = [#tpu.dimension_semantics<parallel>], iteration_bounds = array<i64: 1>, scalar_prefetch = 0 : i64, scratch_operands = 0 : i64, tpu.core_type = #tpu.core_type<tc>, window_params = [{transform_indices = @transform_0, window_bounds = array<i64: 8, 16>}, {transform_indices = @transform_1, window_bounds = array<i64: 8, 4>}, {pipeline_mode = #tpu.pipeline_mode<synchronous>, transform_indices = @transform_2, window_bounds = array<i64: 16, 32>}, {pipeline_mode = #tpu.pipeline_mode<synchronous>, transform_indices = @transform_3, window_bounds = array<i64: 4, 32>}, {pipeline_mode = #tpu.pipeline_mode<synchronous>, transform_indices = @transform_4, window_bounds = array<i64: 1, 32>}, {pipeline_mode = #tpu.pipeline_mode<synchronous>, transform_indices = @transform_5, window_bounds = array<i64: 32, 32>}, {pipeline_mode = #tpu.pipeline_mode<synchronous>, transform_indices = @transform_6, window_bounds = array<i64: 1, 32>}, {pipeline_mode = #tpu.pipeline_mode<synchronous>, transform_indices = @transform_7, window_bounds = array<i64: 32, 16>}, {pipeline_mode = #tpu.pipeline_mode<synchronous>, transform_indices = @transform_8, window_bounds = array<i64: 1, 16>}, {transform_indices = @transform_9, window_bounds = array<i64: 8, 16>}]} {
    %c0 = arith.constant 0 : index
    %c0_0 = arith.constant 0 : index
    %0 = vector.load %arg1[%c0, %c0_0] : memref<8x16xf32, #tpu.memory_space<vmem>>, vector<8x16xf32>
    %c0_1 = arith.constant 0 : index
    %c0_2 = arith.constant 0 : index
    %1 = vector.load %arg3[%c0_1, %c0_2] : memref<16x32xf32, #tpu.memory_space<vmem>>, vector<16x32xf32>
    %cst = arith.constant dense<0.000000e+00> : vector<8x32xf32>
    %2 = tpu.matmul %0, %1, %cst {dimension_numbers = #tpu.dot_dimension_numbers<[1], [0], [0], [1], [0, 0, 1, 1], [], []>} : vector<8x16xf32>, vector<16x32xf32>, vector<8x32xf32> -> vector<8x32xf32>
    %c0_3 = arith.constant 0 : index
    %c0_4 = arith.constant 0 : index
    %3 = vector.load %arg2[%c0_3, %c0_4] : memref<8x4xf32, #tpu.memory_space<vmem>>, vector<8x4xf32>
    %c0_5 = arith.constant 0 : index
    %c0_6 = arith.constant 0 : index
    %4 = vector.load %arg4[%c0_5, %c0_6] : memref<4x32xf32, #tpu.memory_space<vmem>>, vector<4x32xf32>
    %cst_7 = arith.constant dense<0.000000e+00> : vector<8x32xf32>
    %5 = tpu.matmul %3, %4, %cst_7 {dimension_numbers = #tpu.dot_dimension_numbers<[1], [0], [0], [1], [0, 0, 1, 1], [], []>} : vector<8x4xf32>, vector<4x32xf32>, vector<8x32xf32> -> vector<8x32xf32>
    %6 = arith.addf %2, %5 : vector<8x32xf32>
    %c0_8 = arith.constant 0 : index
    %c0_9 = arith.constant 0 : index
    %7 = vector.load %arg5[%c0_8, %c0_9] : memref<1x32xf32, #tpu.memory_space<vmem>>, vector<1x32xf32>
    %8 = vector.broadcast %7 : vector<1x32xf32> to vector<8x32xf32>
    %9 = arith.addf %6, %8 : vector<8x32xf32>
    %cst_10 = arith.constant 0.000000e+00 : f32
    %10 = vector.broadcast %cst_10 : f32 to vector<8x32xf32>
    %11 = arith.maximumf %9, %10 : vector<8x32xf32>
    %c0_11 = arith.constant 0 : index
    %c0_12 = arith.constant 0 : index
    %12 = vector.load %arg6[%c0_11, %c0_12] : memref<32x32xf32, #tpu.memory_space<vmem>>, vector<32x32xf32>
    %cst_13 = arith.constant dense<0.000000e+00> : vector<8x32xf32>
    %13 = tpu.matmul %11, %12, %cst_13 {dimension_numbers = #tpu.dot_dimension_numbers<[1], [0], [0], [1], [0, 0, 1, 1], [], []>} : vector<8x32xf32>, vector<32x32xf32>, vector<8x32xf32> -> vector<8x32xf32>
    %c0_14 = arith.constant 0 : index
    %c0_15 = arith.constant 0 : index
    %14 = vector.load %arg7[%c0_14, %c0_15] : memref<1x32xf32, #tpu.memory_space<vmem>>, vector<1x32xf32>
    %15 = vector.broadcast %14 : vector<1x32xf32> to vector<8x32xf32>
    %16 = arith.addf %13, %15 : vector<8x32xf32>
    %cst_16 = arith.constant 0.000000e+00 : f32
    %17 = vector.broadcast %cst_16 : f32 to vector<8x32xf32>
    %18 = arith.maximumf %16, %17 : vector<8x32xf32>
    %c0_17 = arith.constant 0 : index
    %c0_18 = arith.constant 0 : index
    %19 = vector.load %arg8[%c0_17, %c0_18] : memref<32x16xf32, #tpu.memory_space<vmem>>, vector<32x16xf32>
    %cst_19 = arith.constant dense<0.000000e+00> : vector<8x16xf32>
    %20 = tpu.matmul %18, %19, %cst_19 {dimension_numbers = #tpu.dot_dimension_numbers<[1], [0], [0], [1], [0, 0, 1, 1], [], []>} : vector<8x32xf32>, vector<32x16xf32>, vector<8x16xf32> -> vector<8x16xf32>
    %c0_20 = arith.constant 0 : index
    %c0_21 = arith.constant 0 : index
    %21 = vector.load %arg9[%c0_20, %c0_21] : memref<1x16xf32, #tpu.memory_space<vmem>>, vector<1x16xf32>
    %22 = vector.broadcast %21 : vector<1x16xf32> to vector<8x16xf32>
    %23 = arith.addf %20, %22 : vector<8x16xf32>
    %c0_22 = arith.constant 0 : index
    %c0_23 = arith.constant 0 : index
    %24 = vector.load %arg10[%c0_22, %c0_23] : memref<8x16xf32, #tpu.memory_space<vmem>>, vector<8x16xf32>
    tpu.vector_store %arg10[%c0_22, %c0_23], %23 {strides = array<i32>} : memref<8x16xf32, #tpu.memory_space<vmem>>, vector<8x16xf32>,
    return
  }
  func.func @transform_0(%arg0: i32) -> (i32, i32) {
    %c0_i32 = arith.constant 0 : i32
    %c0_i32_0 = arith.constant 0 : i32
    return %arg0, %c0_i32 : i32, i32
  }
  func.func @transform_1(%arg0: i32) -> (i32, i32) {
    %c0_i32 = arith.constant 0 : i32
    %c0_i32_0 = arith.constant 0 : i32
    return %arg0, %c0_i32 : i32, i32
  }
  func.func @transform_2(%arg0: i32) -> (i32, i32) {
    %c0_i32 = arith.constant 0 : i32
    %c0_i32_0 = arith.constant 0 : i32
    %c0_i32_1 = arith.constant 0 : i32
    return %c0_i32, %c0_i32_0 : i32, i32
  }
  func.func @transform_3(%arg0: i32) -> (i32, i32) {
    %c0_i32 = arith.constant 0 : i32
    %c0_i32_0 = arith.constant 0 : i32
    %c0_i32_1 = arith.constant 0 : i32
    return %c0_i32, %c0_i32_0 : i32, i32
  }
  func.func @transform_4(%arg0: i32) -> (i32, i32) {
    %c0_i32 = arith.constant 0 : i32
    %c0_i32_0 = arith.constant 0 : i32
    %c0_i32_1 = arith.constant 0 : i32
    return %c0_i32, %c0_i32_0 : i32, i32
  }
  func.func @transform_5(%arg0: i32) -> (i32, i32) {
    %c0_i32 = arith.constant 0 : i32
    %c0_i32_0 = arith.constant 0 : i32
    %c0_i32_1 = arith.constant 0 : i32
    return %c0_i32, %c0_i32_0 : i32, i32
  }
  func.func @transform_6(%arg0: i32) -> (i32, i32) {
    %c0_i32 = arith.constant 0 : i32
    %c0_i32_0 = arith.constant 0 : i32
    %c0_i32_1 = arith.constant 0 : i32
    return %c0_i32, %c0_i32_0 : i32, i32
  }
  func.func @transform_7(%arg0: i32) -> (i32, i32) {
    %c0_i32 = arith.constant 0 : i32
    %c0_i32_0 = arith.constant 0 : i32
    %c0_i32_1 = arith.constant 0 : i32
    return %c0_i32, %c0_i32_0 : i32, i32
  }
  func.func @transform_8(%arg0: i32) -> (i32, i32) {
    %c0_i32 = arith.constant 0 : i32
    %c0_i32_0 = arith.constant 0 : i32
    %c0_i32_1 = arith.constant 0 : i32
    return %c0_i32, %c0_i32_0 : i32, i32
  }
  func.func @transform_9(%arg0: i32) -> (i32, i32) {
    %c0_i32 = arith.constant 0 : i32
    %c0_i32_0 = arith.constant 0 : i32
    return %arg0, %c0_i32 : i32, i32
  }
}

module attributes {stable_mosaic.version = 11 : i64} {
  func.func @_mlp_kernel(%arg0: i32, %arg1: memref<8x16xf32, #tpu.memory_space<vmem>>, %arg2: memref<8x4xf32, #tpu.memory_space<vmem>>, %arg3: memref<16x32xf32, #tpu.memory_space<vmem>>, %arg4: memref<4x32xf32, #tpu.memory_space<vmem>>, %arg5: memref<1x32xf32, #tpu.memory_space<vmem>>, %arg6: memref<32x32xf32, #tpu.memory_space<vmem>>, %arg7: memref<1x32xf32, #tpu.memory_space<vmem>>, %arg8: memref<32x16xf32, #tpu.memory_space<vmem>>, %arg9: memref<1x16xf32, #tpu.memory_space<vmem>>, %arg10: memref<8x16xf32, #tpu.memory_space<vmem>>) attributes {dimension_semantics = [#tpu.dimension_semantics<parallel>], iteration_bounds = array<i64: 1>, scalar_prefetch = 0 : i64, scratch_operands = 0 : i64, tpu.core_type = #tpu.core_type<tc>, window_params = [{transform_indices = @transform_0, window_bounds = array<i64: 8, 16>}, {transform_indices = @transform_1, window_bounds = array<i64: 8, 4>}, {pipeline_mode = #tpu.pipeline_mode<synchronous>, transform_indices = @transform_2, window_bounds = array<i64: 16, 32>}, {pipeline_mode = #tpu.pipeline_mode<synchronous>, transform_indices = @transform_3, window_bounds = array<i64: 4, 32>}, {pipeline_mode = #tpu.pipeline_mode<synchronous>, transform_indices = @transform_4, window_bounds = array<i64: 1, 32>}, {pipeline_mode = #tpu.pipeline_mode<synchronous>, transform_indices = @transform_5, window_bounds = array<i64: 32, 32>}, {pipeline_mode = #tpu.pipeline_mode<synchronous>, transform_indices = @transform_6, window_bounds = array<i64: 1, 32>}, {pipeline_mode = #tpu.pipeline_mode<synchronous>, transform_indices = @transform_7, window_bounds = array<i64: 32, 16>}, {pipeline_mode = #tpu.pipeline_mode<synchronous>, transform_indices = @transform_8, window_bounds = array<i64: 1, 16>}, {transform_indices = @transform_9, window_bounds = array<i64: 8, 16>}]} {
    %c0 = arith.constant 0 : index
    %c0_0 = arith.constant 0 : index
    %0 = vector.load %arg1[%c0, %c0_0] : memref<8x16xf32, #tpu.memory_space<vmem>>, vector<8x16xf32>
    %c0_1 = arith.constant 0 : index
    %c0_2 = arith.constant 0 : index
    %1 = vector.load %arg3[%c0_1, %c0_2] : memref<16x32xf32, #tpu.memory_space<vmem>>, vector<16x32xf32>
    %cst = arith.constant dense<0.000000e+00> : vector<8x32xf32>
    %2 = tpu.matmul %0, %1, %cst {dimension_numbers = #tpu.dot_dimension_numbers<[1], [0], [0], [1], [0, 0, 1, 1], [], []>} : vector<8x16xf32>, vector<16x32xf32>, vector<8x32xf32> -> vector<8x32xf32>
    %c0_3 = arith.constant 0 : index
    %c0_4 = arith.constant 0 : index
    %3 = vector.load %arg2[%c0_3, %c0_4] : memref<8x4xf32, #tpu.memory_space<vmem>>, vector<8x4xf32>
    %c0_5 = arith.constant 0 : index
    %c0_6 = arith.constant 0 : index
    %4 = vector.load %arg4[%c0_5, %c0_6] : memref<4x32xf32, #tpu.memory_space<vmem>>, vector<4x32xf32>
    %cst_7 = arith.constant dense<0.000000e+00> : vector<8x32xf32>
    %5 = tpu.matmul %3, %4, %cst_7 {dimension_numbers = #tpu.dot_dimension_numbers<[1], [0], [0], [1], [0, 0, 1, 1], [], []>} : vector<8x4xf32>, vector<4x32xf32>, vector<8x32xf32> -> vector<8x32xf32>
    %6 = arith.addf %2, %5 : vector<8x32xf32>
    %c0_8 = arith.constant 0 : index
    %c0_9 = arith.constant 0 : index
    %7 = vector.load %arg5[%c0_8, %c0_9] : memref<1x32xf32, #tpu.memory_space<vmem>>, vector<1x32xf32>
    %8 = vector.broadcast %7 : vector<1x32xf32> to vector<8x32xf32>
    %9 = arith.addf %6, %8 : vector<8x32xf32>
    %cst_10 = arith.constant 0.000000e+00 : f32
    %10 = vector.broadcast %cst_10 : f32 to vector<8x32xf32>
    %11 = arith.maximumf %9, %10 : vector<8x32xf32>
    %c0_11 = arith.constant 0 : index
    %c0_12 = arith.constant 0 : index
    %12 = vector.load %arg6[%c0_11, %c0_12] : memref<32x32xf32, #tpu.memory_space<vmem>>, vector<32x32xf32>
    %cst_13 = arith.constant dense<0.000000e+00> : vector<8x32xf32>
    %13 = tpu.matmul %11, %12, %cst_13 {dimension_numbers = #tpu.dot_dimension_numbers<[1], [0], [0], [1], [0, 0, 1, 1], [], []>} : vector<8x32xf32>, vector<32x32xf32>, vector<8x32xf32> -> vector<8x32xf32>
    %c0_14 = arith.constant 0 : index
    %c0_15 = arith.constant 0 : index
    %14 = vector.load %arg7[%c0_14, %c0_15] : memref<1x32xf32, #tpu.memory_space<vmem>>, vector<1x32xf32>
    %15 = vector.broadcast %14 : vector<1x32xf32> to vector<8x32xf32>
    %16 = arith.addf %13, %15 : vector<8x32xf32>
    %cst_16 = arith.constant 0.000000e+00 : f32
    %17 = vector.broadcast %cst_16 : f32 to vector<8x32xf32>
    %18 = arith.maximumf %16, %17 : vector<8x32xf32>
    %c0_17 = arith.constant 0 : index
    %c0_18 = arith.constant 0 : index
    %19 = vector.load %arg8[%c0_17, %c0_18] : memref<32x16xf32, #tpu.memory_space<vmem>>, vector<32x16xf32>
    %cst_19 = arith.constant dense<0.000000e+00> : vector<8x16xf32>
    %20 = tpu.matmul %18, %19, %cst_19 {dimension_numbers = #tpu.dot_dimension_numbers<[1], [0], [0], [1], [0, 0, 1, 1], [], []>} : vector<8x32xf32>, vector<32x16xf32>, vector<8x16xf32> -> vector<8x16xf32>
    %c0_20 = arith.constant 0 : index
    %c0_21 = arith.constant 0 : index
    %21 = vector.load %arg9[%c0_20, %c0_21] : memref<1x16xf32, #tpu.memory_space<vmem>>, vector<1x16xf32>
    %22 = vector.broadcast %21 : vector<1x16xf32> to vector<8x16xf32>
    %23 = arith.addf %20, %22 : vector<8x16xf32>
    %c0_22 = arith.constant 0 : index
    %c0_23 = arith.constant 0 : index
    %24 = vector.load %arg10[%c0_22, %c0_23] : memref<8x16xf32, #tpu.memory_space<vmem>>, vector<8x16xf32>
    tpu.vector_store %arg10[%c0_22, %c0_23], %23 {strides = array<i32>} : memref<8x16xf32, #tpu.memory_space<vmem>>, vector<8x16xf32>,
    return
  }
  func.func @transform_0(%arg0: i32) -> (i32, i32) {
    %c0_i32 = arith.constant 0 : i32
    %c0_i32_0 = arith.constant 0 : i32
    return %arg0, %c0_i32 : i32, i32
  }
  func.func @transform_1(%arg0: i32) -> (i32, i32) {
    %c0_i32 = arith.constant 0 : i32
    %c0_i32_0 = arith.constant 0 : i32
    return %arg0, %c0_i32 : i32, i32
  }
  func.func @transform_2(%arg0: i32) -> (i32, i32) {
    %c0_i32 = arith.constant 0 : i32
    %c0_i32_0 = arith.constant 0 : i32
    %c0_i32_1 = arith.constant 0 : i32
    return %c0_i32, %c0_i32_0 : i32, i32
  }
  func.func @transform_3(%arg0: i32) -> (i32, i32) {
    %c0_i32 = arith.constant 0 : i32
    %c0_i32_0 = arith.constant 0 : i32
    %c0_i32_1 = arith.constant 0 : i32
    return %c0_i32, %c0_i32_0 : i32, i32
  }
  func.func @transform_4(%arg0: i32) -> (i32, i32) {
    %c0_i32 = arith.constant 0 : i32
    %c0_i32_0 = arith.constant 0 : i32
    %c0_i32_1 = arith.constant 0 : i32
    return %c0_i32, %c0_i32_0 : i32, i32
  }
  func.func @transform_5(%arg0: i32) -> (i32, i32) {
    %c0_i32 = arith.constant 0 : i32
    %c0_i32_0 = arith.constant 0 : i32
    %c0_i32_1 = arith.constant 0 : i32
    return %c0_i32, %c0_i32_0 : i32, i32
  }
  func.func @transform_6(%arg0: i32) -> (i32, i32) {
    %c0_i32 = arith.constant 0 : i32
    %c0_i32_0 = arith.constant 0 : i32
    %c0_i32_1 = arith.constant 0 : i32
    return %c0_i32, %c0_i32_0 : i32, i32
  }
  func.func @transform_7(%arg0: i32) -> (i32, i32) {
    %c0_i32 = arith.constant 0 : i32
    %c0_i32_0 = arith.constant 0 : i32
    %c0_i32_1 = arith.constant 0 : i32
    return %c0_i32, %c0_i32_0 : i32, i32
  }
  func.func @transform_8(%arg0: i32) -> (i32, i32) {
    %c0_i32 = arith.constant 0 : i32
    %c0_i32_0 = arith.constant 0 : i32
    %c0_i32_1 = arith.constant 0 : i32
    return %c0_i32, %c0_i32_0 : i32, i32
  }
  func.func @transform_9(%arg0: i32) -> (i32, i32) {
    %c0_i32 = arith.constant 0 : i32
    %c0_i32_0 = arith.constant 0 : i32
    return %arg0, %c0_i32 : i32, i32
  }
}

</mosaic_0001>

<llo_original>
// kernel: tpu_custom_call.1
$region0: #{tpu_custom_call.1}
  #allocation0 [shape = 'u32[]', space=smem, size = 0x4, offset = 0x4, fixed_abs, tag = 'smem constant byte address 0x4 - core index']
  #allocation1 [shape = 'u32[144,128]{1,0:T(1,128)}', space=vmem, size = 0x12000, scoped, tag = 'internal scratch']
  %s0 = inlined_call_operand.vmem [shape: f32[8,16], index: 0, kind: input, shape index: {}]
  %s1 = inlined_call_operand.vmem [shape: f32[8,4], index: 1, kind: input, shape index: {}]
  %s2 = inlined_call_operand.vmem [shape: f32[16,32], index: 2, kind: input, shape index: {}]
  %s3 = inlined_call_operand.vmem [shape: f32[4,32], index: 3, kind: input, shape index: {}]
  %s4 = inlined_call_operand.vmem [shape: f32[1,32], index: 4, kind: input, shape index: {}]
  %s5 = inlined_call_operand.vmem [shape: f32[32,32], index: 5, kind: input, shape index: {}]
  %s6 = inlined_call_operand.vmem [shape: f32[1,32], index: 6, kind: input, shape index: {}]
  %s7 = inlined_call_operand.vmem [shape: f32[32,16], index: 7, kind: input, shape index: {}]
  %s8 = inlined_call_operand.vmem [shape: f32[1,16], index: 8, kind: input, shape index: {}]
  %s9 = inlined_call_operand.hbm [shape: f32[8,16], index: 9, kind: output, shape index: {}]
  %s10 = sld [smem:[#allocation0]]
  $region46: #{tpu_custom_call.1} parent=0
    _
  %s12 = ssub.s32 1, %s10
  %s13 = scalar_select 0, %s12, %s10
  $region1: #{tpu_custom_call.1} parent=0
    #allocation2 [shape = 'u8[4096]{0}', space=vmem, size = 0x1000, scoped, tag = 'output window, operand 0, single buffered']
    #allocation3 [shape = 's32[1]{0}', space=sflag, size = 0x4, scoped, tag = 'scoped memory for tpu_custom_call.1']
    %14 = vsyncpa [#allocation3], 0
    // Predicated region
    $region2: #{tpu_custom_call.1} parent=1 // pred_check
      _
    $region3: #{tpu_custom_call.1} parent=1 // pred_check_branch
      %16 = sbr.rel (0) target = $region5
    $region4: #{tpu_custom_call.1} parent=1 // pred_region
      _
    $region5: #{tpu_custom_call.1} parent=1 // pred_fallthru
      _
    // Predicated region
    $region6: #{tpu_custom_call.1} parent=1 // pred_check
      _
    $region7: #{tpu_custom_call.1} parent=1 // pred_check_branch
      %18 = sbr.rel (0) target = $region9
    $region8: #{tpu_custom_call.1} parent=1 // pred_region
      _
    $region9: #{tpu_custom_call.1} parent=1 // pred_fallthru
      _
    // Predicated region
    $region10: #{tpu_custom_call.1} parent=1 // pred_check
      _
    $region11: #{tpu_custom_call.1} parent=1 // pred_check_branch
      %20 = sbr.rel (0) target = $region13
    $region12: #{tpu_custom_call.1} parent=1 // pred_region
      _
    $region13: #{tpu_custom_call.1} parent=1 // pred_fallthru
      _
    // Predicated region
    $region14: #{tpu_custom_call.1} parent=1 // pred_check
      _
    $region15: #{tpu_custom_call.1} parent=1 // pred_check_branch
      %22 = sbr.rel (0) target = $region17
    $region16: #{tpu_custom_call.1} parent=1 // pred_region
      _
    $region17: #{tpu_custom_call.1} parent=1 // pred_fallthru
      _
    // Predicated region
    $region18: #{tpu_custom_call.1} parent=1 // pred_check
      _
    $region19: #{tpu_custom_call.1} parent=1 // pred_check_branch
      %24 = sbr.rel (0) target = $region21
    $region20: #{tpu_custom_call.1} parent=1 // pred_region
      _
    $region21: #{tpu_custom_call.1} parent=1 // pred_fallthru
      _
    // Predicated region
    $region22: #{tpu_custom_call.1} parent=1 // pred_check
      _
    $region23: #{tpu_custom_call.1} parent=1 // pred_check_branch
      %26 = sbr.rel (0) target = $region25
    $region24: #{tpu_custom_call.1} parent=1 // pred_region
      _
    $region25: #{tpu_custom_call.1} parent=1 // pred_fallthru
      _
    // Predicated region
    $region26: #{tpu_custom_call.1} parent=1 // pred_check
      _
    $region27: #{tpu_custom_call.1} parent=1 // pred_check_branch
      %28 = sbr.rel (0) target = $region29
    $region28: #{tpu_custom_call.1} parent=1 // pred_region
      _
    $region29: #{tpu_custom_call.1} parent=1 // pred_fallthru
      _
    // Predicated region
    $region30: #{tpu_custom_call.1} parent=1 // pred_check
      _
    $region31: #{tpu_custom_call.1} parent=1 // pred_check_branch
      %30 = sbr.rel (0) target = $region33
    $region32: #{tpu_custom_call.1} parent=1 // pred_region
      _
    $region33: #{tpu_custom_call.1} parent=1 // pred_fallthru
      _
    // Predicated region
    $region34: #{tpu_custom_call.1} parent=1 // pred_check
      _
    $region35: #{tpu_custom_call.1} parent=1 // pred_check_branch
      %32 = sbr.rel (0) target = $region37
    $region36: #{tpu_custom_call.1} parent=1 // pred_region
      _
    $region37: #{tpu_custom_call.1} parent=1 // pred_fallthru
      _
    %v33 = vld [vmem:[%s0] sm:$0xff]
    %v34 = vld [vmem:[%s2] sm:$0xff]
    %v35 = vld [vmem:[%s2 + $0x8] sm:$0xff]
    %v36 = vld [vmem:[%s1] sm:$0xff]
    %v37 = vld [vmem:[%s3] sm:$0xf]
    %vm38 = vcmask 31744
    %v40 = vsel %vm38, %v36, 0
    %vm42 = vcmask 1043456
    %v44 = vsel %vm42, %v37, 0
    %46 = vmatprep.subr.mxu0 0.0
    %47 = vmatpush1.msra.mxu0 %v44
    %48 = vmatprep.subr.mxu0 0.0
    %49 = vmatpush1.msra.mxu0 0.0
    %50 = vmatprep.subr.mxu0 0.0
    %51 = vmatpush1.msra.mxu0 0.0
    %52 = vmatprep.subr.mxu0 0.0
    %53 = vmatpush1.msra.mxu0 0.0
    %54 = vmatprep.subr.mxu0 0.0
    %55 = vmatpush1.msra.mxu0 0.0
    %56 = vmatprep.subr.mxu0 0.0
    %57 = vmatpush1.msra.mxu0 0.0
    %58 = vmatprep.subr.mxu0 0.0
    %59 = vmatpush1.msra.mxu0 0.0
    %60 = vmatprep.subr.mxu0 0.0
    %61 = vmatpush1.msra.mxu0 0.0
    %62 = vmatprep.subr.mxu0 0.0
    %63 = vmatpush1.msra.mxu0 0.0
    %64 = vmatprep.subr.mxu0 0.0
    %65 = vmatpush1.msra.mxu0 0.0
    %66 = vmatprep.subr.mxu0 0.0
    %67 = vmatpush1.msra.mxu0 0.0
    %68 = vmatprep.subr.mxu0 0.0
    %69 = vmatpush1.msra.mxu0 0.0
    %70 = vmatprep.subr.mxu0 0.0
    %71 = vmatpush1.msra.mxu0 0.0
    %72 = vmatprep.subr.mxu0 0.0
    %73 = vmatpush1.msra.mxu0 0.0
    %74 = vmatprep.subr.mxu0 0.0
    %75 = vmatpush1.msra.mxu0 0.0
    %76 = vmatprep.subr.mxu0 0.0
    %77 = vmatpush1.msra.mxu0 0.0
    %78 = vmatprep.subr.mxu0 0.0
    %79 = vmatpush1.msra.mxu0 0.0
    %80 = vmatprep.subr.mxu0 0.0
    %81 = vmatpush1.msra.mxu0 0.0
    %82 = vmatprep.subr.mxu0 0.0
    %83 = vmatpush1.msra.mxu0 0.0
    %84 = vmatprep.subr.mxu0 0.0
    %85 = vmatpush1.msra.mxu0 0.0
    %86 = vmatprep.subr.mxu0 0.0
    %87 = vmatpush1.msra.mxu0 0.0
    %88 = vmatprep.subr.mxu0 0.0
    %89 = vmatpush1.msra.mxu0 0.0
    %90 = vmatprep.subr.mxu0 0.0
    %91 = vmatpush1.msra.mxu0 0.0
    %92 = vmatprep.subr.mxu0 0.0
    %93 = vmatpush1.msra.mxu0 0.0
    %94 = vmatprep.subr.mxu0 0.0
    %95 = vmatpush1.msra.mxu0 0.0
    %96 = vmatprep.subr.mxu0 0.0
    %97 = vmatpush1.msra.mxu0 0.0
    %98 = vmatprep.subr.mxu0 0.0
    %99 = vmatpush1.msra.mxu0 0.0
    %100 = vmatprep.subr.mxu0 0.0
    %101 = vmatpush1.msra.mxu0 0.0
    %102 = vmatprep.subr.mxu0 0.0
    %103 = vmatpush1.msra.mxu0 0.0
    %104 = vmatprep.subr.mxu0 0.0
    %105 = vmatpush1.msra.mxu0 0.0
    %106 = vmatprep.subr.mxu0 0.0
    %107 = vmatpush1.msra.mxu0 0.0
    %108 = vmatprep.subr.mxu0 0.0
    %109 = vmatpush1.msra.mxu0 0.0
    %110 = vmatprep.mubr.f32.mxu0 0.0
    %111 = vmatmul.mubr.f32.gmra.mrb[0].mxu0 %v40
    %v112 = vpop.f32.mrb[0].mxu0
    %v113 = vadd.f32 0.0, %v112
    %v114 = vpop.f32.mrb[0].mxu0
    %115 = vdwg.mxu0
    %vm116 = vcmask 130048
    %v118 = vsel %vm116, %v33, 0
    %120 = vmatprep.subr.mxu0 0.0
    %121 = vmatpush1.msra.mxu0 %v34
    %122 = vmatprep.subr.mxu0 0.0
    %123 = vmatpush1.msra.mxu0 %v35
    %124 = vmatprep.subr.mxu0 0.0
    %125 = vmatpush1.msra.mxu0 0.0
    %126 = vmatprep.subr.mxu0 0.0
    %127 = vmatpush1.msra.mxu0 0.0
    %128 = vmatprep.subr.mxu0 0.0
    %129 = vmatpush1.msra.mxu0 0.0
    %130 = vmatprep.subr.mxu0 0.0
    %131 = vmatpush1.msra.mxu0 0.0
    %132 = vmatprep.subr.mxu0 0.0
    %133 = vmatpush1.msra.mxu0 0.0
    %134 = vmatprep.subr.mxu0 0.0
    %135 = vmatpush1.msra.mxu0 0.0
    %136 = vmatprep.subr.mxu0 0.0
    %137 = vmatpush1.msra.mxu0 0.0
    %138 = vmatprep.subr.mxu0 0.0
    %139 = vmatpush1.msra.mxu0 0.0
    %140 = vmatprep.subr.mxu0 0.0
    %141 = vmatpush1.msra.mxu0 0.0
    %142 = vmatprep.subr.mxu0 0.0
    %143 = vmatpush1.msra.mxu0 0.0
    %144 = vmatprep.subr.mxu0 0.0
    %145 = vmatpush1.msra.mxu0 0.0
    %146 = vmatprep.subr.mxu0 0.0
    %147 = vmatpush1.msra.mxu0 0.0
    %148 = vmatprep.subr.mxu0 0.0
    %149 = vmatpush1.msra.mxu0 0.0
    %150 = vmatprep.subr.mxu0 0.0
    %151 = vmatpush1.msra.mxu0 0.0
    %152 = vmatprep.subr.mxu0 0.0
    %153 = vmatpush1.msra.mxu0 0.0
    %154 = vmatprep.subr.mxu0 0.0
    %155 = vmatpush1.msra.mxu0 0.0
    %156 = vmatprep.subr.mxu0 0.0
    %157 = vmatpush1.msra.mxu0 0.0
    %158 = vmatprep.subr.mxu0 0.0
    %159 = vmatpush1.msra.mxu0 0.0
    %160 = vmatprep.subr.mxu0 0.0
    %161 = vmatpush1.msra.mxu0 0.0
    %162 = vmatprep.subr.mxu0 0.0
    %163 = vmatpush1.msra.mxu0 0.0
    %164 = vmatprep.subr.mxu0 0.0
    %165 = vmatpush1.msra.mxu0 0.0
    %166 = vmatprep.subr.mxu0 0.0
    %167 = vmatpush1.msra.mxu0 0.0
    %168 = vmatprep.subr.mxu0 0.0
    %169 = vmatpush1.msra.mxu0 0.0
    %170 = vmatprep.subr.mxu0 0.0
    %171 = vmatpush1.msra.mxu0 0.0
    %172 = vmatprep.subr.mxu0 0.0
    %173 = vmatpush1.msra.mxu0 0.0
    %174 = vmatprep.subr.mxu0 0.0
    %175 = vmatpush1.msra.mxu0 0.0
    %176 = vmatprep.subr.mxu0 0.0
    %177 = vmatpush1.msra.mxu0 0.0
    %178 = vmatprep.subr.mxu0 0.0
    %179 = vmatpush1.msra.mxu0 0.0
    %180 = vmatprep.subr.mxu0 0.0
    %181 = vmatpush1.msra.mxu0 0.0
    %182 = vmatprep.subr.mxu0 0.0
    %183 = vmatpush1.msra.mxu0 0.0
    %184 = vmatprep.mubr.f32.mxu0 0.0
    %185 = vmatmul.mubr.f32.gmra.mrb[0].mxu0 %v118
    %v186 = vpop.f32.mrb[0].mxu0
    %v187 = vadd.f32 %v113, %v186
    %v188 = vpop.f32.mrb[0].mxu0
    %189 = vdwg.mxu0
    %v190 = vld [vmem:[%s4] sm:$0x1]
    %v192 = vlaneseq
    %v193 = vshrl.u32 %v192, 7
    %v194 = vsub.s32 0, %v193
    %v195 = vrot.slane %v190, %v194
    %v197 = vadd.f32 %v187, %v195
    %v198 = vmax.f32 %v197, 0.0
    %v199 = vld [vmem:[%s5] sm:$0xff]
    %v200 = vld [vmem:[%s5 + $0x8] sm:$0xff]
    %v201 = vld [vmem:[%s5 + $0x10] sm:$0xff]
    %v202 = vld [vmem:[%s5 + $0x18] sm:$0xff]
    %v203 = vld [vmem:[%s6] sm:$0x1]
    %v205 = vlaneseq
    %v206 = vshrl.u32 %v205, 7
    %v207 = vsub.s32 0, %v206
    %v208 = vrot.slane %v203, %v207
    %vm210 = vcmask 261120
    %v212 = vsel %vm210, %v198, 0
    %214 = vmatprep.subr.mxu0 0.0
    %215 = vmatpush1.msra.mxu0 %v199
    %216 = vmatprep.subr.mxu0 0.0
    %217 = vmatpush1.msra.mxu0 %v200
    %218 = vmatprep.subr.mxu0 0.0
    %219 = vmatpush1.msra.mxu0 %v201
    %220 = vmatprep.subr.mxu0 0.0
    %221 = vmatpush1.msra.mxu0 %v202
    %222 = vmatprep.subr.mxu0 0.0
    %223 = vmatpush1.msra.mxu0 0.0
    %224 = vmatprep.subr.mxu0 0.0
    %225 = vmatpush1.msra.mxu0 0.0
    %226 = vmatprep.subr.mxu0 0.0
    %227 = vmatpush1.msra.mxu0 0.0
    %228 = vmatprep.subr.mxu0 0.0
    %229 = vmatpush1.msra.mxu0 0.0
    %230 = vmatprep.subr.mxu0 0.0
    %231 = vmatpush1.msra.mxu0 0.0
    %232 = vmatprep.subr.mxu0 0.0
    %233 = vmatpush1.msra.mxu0 0.0
    %234 = vmatprep.subr.mxu0 0.0
    %235 = vmatpush1.msra.mxu0 0.0
    %236 = vmatprep.subr.mxu0 0.0
    %237 = vmatpush1.msra.mxu0 0.0
    %238 = vmatprep.subr.mxu0 0.0
    %239 = vmatpush1.msra.mxu0 0.0
    %240 = vmatprep.subr.mxu0 0.0
    %241 = vmatpush1.msra.mxu0 0.0
    %242 = vmatprep.subr.mxu0 0.0
    %243 = vmatpush1.msra.mxu0 0.0
    %244 = vmatprep.subr.mxu0 0.0
    %245 = vmatpush1.msra.mxu0 0.0
    %246 = vmatprep.subr.mxu0 0.0
    %247 = vmatpush1.msra.mxu0 0.0
    %248 = vmatprep.subr.mxu0 0.0
    %249 = vmatpush1.msra.mxu0 0.0
    %250 = vmatprep.subr.mxu0 0.0
    %251 = vmatpush1.msra.mxu0 0.0
    %252 = vmatprep.subr.mxu0 0.0
    %253 = vmatpush1.msra.mxu0 0.0
    %254 = vmatprep.subr.mxu0 0.0
    %255 = vmatpush1.msra.mxu0 0.0
    %256 = vmatprep.subr.mxu0 0.0
    %257 = vmatpush1.msra.mxu0 0.0
    %258 = vmatprep.subr.mxu0 0.0
    %259 = vmatpush1.msra.mxu0 0.0
    %260 = vmatprep.subr.mxu0 0.0
    %261 = vmatpush1.msra.mxu0 0.0
    %262 = vmatprep.subr.mxu0 0.0
    %263 = vmatpush1.msra.mxu0 0.0
    %264 = vmatprep.subr.mxu0 0.0
    %265 = vmatpush1.msra.mxu0 0.0
    %266 = vmatprep.subr.mxu0 0.0
    %267 = vmatpush1.msra.mxu0 0.0
    %268 = vmatprep.subr.mxu0 0.0
    %269 = vmatpush1.msra.mxu0 0.0
    %270 = vmatprep.subr.mxu0 0.0
    %271 = vmatpush1.msra.mxu0 0.0
    %272 = vmatprep.subr.mxu0 0.0
    %273 = vmatpush1.msra.mxu0 0.0
    %274 = vmatprep.subr.mxu0 0.0
    %275 = vmatpush1.msra.mxu0 0.0
    %276 = vmatprep.subr.mxu0 0.0
    %277 = vmatpush1.msra.mxu0 0.0
    %278 = vmatprep.mubr.f32.mxu0 0.0
    %279 = vmatmul.mubr.f32.gmra.mrb[0].mxu0 %v212
    %v280 = vpop.f32.mrb[0].mxu0
    %v281 = vadd.f32 %v208, %v280
    %v282 = vpop.f32.mrb[0].mxu0
    %283 = vdwg.mxu0
    %v284 = vmax.f32 %v281, 0.0
    %v285 = vld [vmem:[%s7] sm:$0xff]
    %v286 = vld [vmem:[%s7 + $0x8] sm:$0xff]
    %v287 = vld [vmem:[%s7 + $0x10] sm:$0xff]
    %v288 = vld [vmem:[%s7 + $0x18] sm:$0xff]
    %v289 = vld [vmem:[%s8] sm:$0x1]
    %v291 = vlaneseq
    %v292 = vshrl.u32 %v291, 7
    %v293 = vsub.s32 0, %v292
    %v294 = vrot.slane %v289, %v293
    %v297 = vsel %vm210, %v284, 0
    %299 = vmatprep.subr.mxu0 0.0
    %300 = vmatpush1.msra.mxu0 %v285
    %301 = vmatprep.subr.mxu0 0.0
    %302 = vmatpush1.msra.mxu0 %v286
    %303 = vmatprep.subr.mxu0 0.0
    %304 = vmatpush1.msra.mxu0 %v287
    %305 = vmatprep.subr.mxu0 0.0
    %306 = vmatpush1.msra.mxu0 %v288
    %307 = vmatprep.subr.mxu0 0.0
    %308 = vmatpush1.msra.mxu0 0.0
    %309 = vmatprep.subr.mxu0 0.0
    %310 = vmatpush1.msra.mxu0 0.0
    %311 = vmatprep.subr.mxu0 0.0
    %312 = vmatpush1.msra.mxu0 0.0
    %313 = vmatprep.subr.mxu0 0.0
    %314 = vmatpush1.msra.mxu0 0.0
    %315 = vmatprep.subr.mxu0 0.0
    %316 = vmatpush1.msra.mxu0 0.0
    %317 = vmatprep.subr.mxu0 0.0
    %318 = vmatpush1.msra.mxu0 0.0
    %319 = vmatprep.subr.mxu0 0.0
    %320 = vmatpush1.msra.mxu0 0.0
    %321 = vmatprep.subr.mxu0 0.0
    %322 = vmatpush1.msra.mxu0 0.0
    %323 = vmatprep.subr.mxu0 0.0
    %324 = vmatpush1.msra.mxu0 0.0
    %325 = vmatprep.subr.mxu0 0.0
    %326 = vmatpush1.msra.mxu0 0.0
    %327 = vmatprep.subr.mxu0 0.0
    %328 = vmatpush1.msra.mxu0 0.0
    %329 = vmatprep.subr.mxu0 0.0
    %330 = vmatpush1.msra.mxu0 0.0
    %331 = vmatprep.subr.mxu0 0.0
    %332 = vmatpush1.msra.mxu0 0.0
    %333 = vmatprep.subr.mxu0 0.0
    %334 = vmatpush1.msra.mxu0 0.0
    %335 = vmatprep.subr.mxu0 0.0
    %336 = vmatpush1.msra.mxu0 0.0
    %337 = vmatprep.subr.mxu0 0.0
    %338 = vmatpush1.msra.mxu0 0.0
    %339 = vmatprep.subr.mxu0 0.0
    %340 = vmatpush1.msra.mxu0 0.0
    %341 = vmatprep.subr.mxu0 0.0
    %342 = vmatpush1.msra.mxu0 0.0
    %343 = vmatprep.subr.mxu0 0.0
    %344 = vmatpush1.msra.mxu0 0.0
    %345 = vmatprep.subr.mxu0 0.0
    %346 = vmatpush1.msra.mxu0 0.0
    %347 = vmatprep.subr.mxu0 0.0
    %348 = vmatpush1.msra.mxu0 0.0
    %349 = vmatprep.subr.mxu0 0.0
    %350 = vmatpush1.msra.mxu0 0.0
    %351 = vmatprep.subr.mxu0 0.0
    %352 = vmatpush1.msra.mxu0 0.0
    %353 = vmatprep.subr.mxu0 0.0
    %354 = vmatpush1.msra.mxu0 0.0
    %355 = vmatprep.subr.mxu0 0.0
    %356 = vmatpush1.msra.mxu0 0.0
    %357 = vmatprep.subr.mxu0 0.0
    %358 = vmatpush1.msra.mxu0 0.0
    %359 = vmatprep.subr.mxu0 0.0
    %360 = vmatpush1.msra.mxu0 0.0
    %361 = vmatprep.subr.mxu0 0.0
    %362 = vmatpush1.msra.mxu0 0.0
    %363 = vmatprep.mubr.f32.mxu0 0.0
    %364 = vmatmul.mubr.f32.gmra.mrb[0].mxu0 %v297
    %v365 = vpop.f32.mrb[0].mxu0
    %v366 = vadd.f32 %v294, %v365
    %v367 = vpop.f32.mrb[0].mxu0
    %368 = vdwg.mxu0
    %369 = vst.msk [vmem:[#allocation2] sm:$0xff] %vm116, %v366
    // Predicated region
    $region38: #{tpu_custom_call.1} parent=1 // pred_check
      _
    $region39: #{tpu_custom_call.1} parent=1 // pred_check_branch
      %371 = sbr.rel (0) target = $region41
    $region40: #{tpu_custom_call.1} parent=1 // pred_region
      %s373 = ssub.s32 128, 128
      %374 = vsyncadd [#allocation3], %s373
      %s376 = sshll.u32 [#allocation2], 4
      %s377 = int_to_ptr.vmem [resolvable:$true] %s376
      %379 = dma.vmem_to_hbm [thread:$0]  %s377, 128, %s9, [#allocation3]
    $region41: #{tpu_custom_call.1} parent=1 // pred_fallthru
      _
    // Predicated region
    $region42: #{tpu_custom_call.1} parent=1 // pred_check
      _
    $region43: #{tpu_custom_call.1} parent=1 // pred_check_branch
      %381 = sbr.rel (0) target = $region45
    $region44: #{tpu_custom_call.1} parent=1 // pred_region
      %382 = dma.done [#allocation3], 128
    $region45: #{tpu_custom_call.1} parent=1 // pred_fallthru
      _
    %383 = vsyncpa [#allocation3], 1

// kernel: tpu_custom_call.1
$region0: #{tpu_custom_call.1}
  #allocation0 [shape = 'u32[]', space=smem, size = 0x4, offset = 0x4, fixed_abs, tag = 'smem constant byte address 0x4 - core index']
  #allocation1 [shape = 'u32[144,128]{1,0:T(1,128)}', space=vmem, size = 0x12000, scoped, tag = 'internal scratch']
  %s0 = inlined_call_operand.vmem [shape: f32[8,16], index: 0, kind: input, shape index: {}]
  %s1 = inlined_call_operand.vmem [shape: f32[8,4], index: 1, kind: input, shape index: {}]
  %s2 = inlined_call_operand.vmem [shape: f32[16,32], index: 2, kind: input, shape index: {}]
  %s3 = inlined_call_operand.vmem [shape: f32[4,32], index: 3, kind: input, shape index: {}]
  %s4 = inlined_call_operand.vmem [shape: f32[1,32], index: 4, kind: input, shape index: {}]
  %s5 = inlined_call_operand.vmem [shape: f32[32,32], index: 5, kind: input, shape index: {}]
  %s6 = inlined_call_operand.vmem [shape: f32[1,32], index: 6, kind: input, shape index: {}]
  %s7 = inlined_call_operand.vmem [shape: f32[32,16], index: 7, kind: input, shape index: {}]
  %s8 = inlined_call_operand.vmem [shape: f32[1,16], index: 8, kind: input, shape index: {}]
  %s9 = inlined_call_operand.hbm [shape: f32[8,16], index: 9, kind: output, shape index: {}]
  %s10 = sld [smem:[#allocation0]]
  $region46: #{tpu_custom_call.1} parent=0
    _
  %s12 = ssub.s32 1, %s10
  %s13 = scalar_select 0, %s12, %s10
  $region1: #{tpu_custom_call.1} parent=0
    #allocation2 [shape = 'u8[4096]{0}', space=vmem, size = 0x1000, scoped, tag = 'output window, operand 0, single buffered']
    #allocation3 [shape = 's32[1]{0}', space=sflag, size = 0x4, scoped, tag = 'scoped memory for tpu_custom_call.1']
    %14 = vsyncpa [#allocation3], 0
    // Predicated region
    $region2: #{tpu_custom_call.1} parent=1 // pred_check
      _
    $region3: #{tpu_custom_call.1} parent=1 // pred_check_branch
      %16 = sbr.rel (0) target = $region5
    $region4: #{tpu_custom_call.1} parent=1 // pred_region
      _
    $region5: #{tpu_custom_call.1} parent=1 // pred_fallthru
      _
    // Predicated region
    $region6: #{tpu_custom_call.1} parent=1 // pred_check
      _
    $region7: #{tpu_custom_call.1} parent=1 // pred_check_branch
      %18 = sbr.rel (0) target = $region9
    $region8: #{tpu_custom_call.1} parent=1 // pred_region
      _
    $region9: #{tpu_custom_call.1} parent=1 // pred_fallthru
      _
    // Predicated region
    $region10: #{tpu_custom_call.1} parent=1 // pred_check
      _
    $region11: #{tpu_custom_call.1} parent=1 // pred_check_branch
      %20 = sbr.rel (0) target = $region13
    $region12: #{tpu_custom_call.1} parent=1 // pred_region
      _
    $region13: #{tpu_custom_call.1} parent=1 // pred_fallthru
      _
    // Predicated region
    $region14: #{tpu_custom_call.1} parent=1 // pred_check
      _
    $region15: #{tpu_custom_call.1} parent=1 // pred_check_branch
      %22 = sbr.rel (0) target = $region17
    $region16: #{tpu_custom_call.1} parent=1 // pred_region
      _
    $region17: #{tpu_custom_call.1} parent=1 // pred_fallthru
      _
    // Predicated region
    $region18: #{tpu_custom_call.1} parent=1 // pred_check
      _
    $region19: #{tpu_custom_call.1} parent=1 // pred_check_branch
      %24 = sbr.rel (0) target = $region21
    $region20: #{tpu_custom_call.1} parent=1 // pred_region
      _
    $region21: #{tpu_custom_call.1} parent=1 // pred_fallthru
      _
    // Predicated region
    $region22: #{tpu_custom_call.1} parent=1 // pred_check
      _
    $region23: #{tpu_custom_call.1} parent=1 // pred_check_branch
      %26 = sbr.rel (0) target = $region25
    $region24: #{tpu_custom_call.1} parent=1 // pred_region
      _
    $region25: #{tpu_custom_call.1} parent=1 // pred_fallthru
      _
    // Predicated region
    $region26: #{tpu_custom_call.1} parent=1 // pred_check
      _
    $region27: #{tpu_custom_call.1} parent=1 // pred_check_branch
      %28 = sbr.rel (0) target = $region29
    $region28: #{tpu_custom_call.1} parent=1 // pred_region
      _
    $region29: #{tpu_custom_call.1} parent=1 // pred_fallthru
      _
    // Predicated region
    $region30: #{tpu_custom_call.1} parent=1 // pred_check
      _
    $region31: #{tpu_custom_call.1} parent=1 // pred_check_branch
      %30 = sbr.rel (0) target = $region33
    $region32: #{tpu_custom_call.1} parent=1 // pred_region
      _
    $region33: #{tpu_custom_call.1} parent=1 // pred_fallthru
      _
    // Predicated region
    $region34: #{tpu_custom_call.1} parent=1 // pred_check
      _
    $region35: #{tpu_custom_call.1} parent=1 // pred_check_branch
      %32 = sbr.rel (0) target = $region37
    $region36: #{tpu_custom_call.1} parent=1 // pred_region
      _
    $region37: #{tpu_custom_call.1} parent=1 // pred_fallthru
      _
    %v33 = vld [vmem:[%s0] sm:$0xff]
    %v34 = vld [vmem:[%s2] sm:$0xff]
    %v35 = vld [vmem:[%s2 + $0x8] sm:$0xff]
    %v36 = vld [vmem:[%s1] sm:$0xff]
    %v37 = vld [vmem:[%s3] sm:$0xf]
    %vm38 = vcmask 31744
    %v40 = vsel %vm38, %v36, 0
    %vm42 = vcmask 1043456
    %v44 = vsel %vm42, %v37, 0
    %46 = vmatprep.subr.mxu0 0.0
    %47 = vmatpush1.msra.mxu0 %v44
    %48 = vmatprep.subr.mxu0 0.0
    %49 = vmatpush1.msra.mxu0 0.0
    %50 = vmatprep.subr.mxu0 0.0
    %51 = vmatpush1.msra.mxu0 0.0
    %52 = vmatprep.subr.mxu0 0.0
    %53 = vmatpush1.msra.mxu0 0.0
    %54 = vmatprep.subr.mxu0 0.0
    %55 = vmatpush1.msra.mxu0 0.0
    %56 = vmatprep.subr.mxu0 0.0
    %57 = vmatpush1.msra.mxu0 0.0
    %58 = vmatprep.subr.mxu0 0.0
    %59 = vmatpush1.msra.mxu0 0.0
    %60 = vmatprep.subr.mxu0 0.0
    %61 = vmatpush1.msra.mxu0 0.0
    %62 = vmatprep.subr.mxu0 0.0
    %63 = vmatpush1.msra.mxu0 0.0
    %64 = vmatprep.subr.mxu0 0.0
    %65 = vmatpush1.msra.mxu0 0.0
    %66 = vmatprep.subr.mxu0 0.0
    %67 = vmatpush1.msra.mxu0 0.0
    %68 = vmatprep.subr.mxu0 0.0
    %69 = vmatpush1.msra.mxu0 0.0
    %70 = vmatprep.subr.mxu0 0.0
    %71 = vmatpush1.msra.mxu0 0.0
    %72 = vmatprep.subr.mxu0 0.0
    %73 = vmatpush1.msra.mxu0 0.0
    %74 = vmatprep.subr.mxu0 0.0
    %75 = vmatpush1.msra.mxu0 0.0
    %76 = vmatprep.subr.mxu0 0.0
    %77 = vmatpush1.msra.mxu0 0.0
    %78 = vmatprep.subr.mxu0 0.0
    %79 = vmatpush1.msra.mxu0 0.0
    %80 = vmatprep.subr.mxu0 0.0
    %81 = vmatpush1.msra.mxu0 0.0
    %82 = vmatprep.subr.mxu0 0.0
    %83 = vmatpush1.msra.mxu0 0.0
    %84 = vmatprep.subr.mxu0 0.0
    %85 = vmatpush1.msra.mxu0 0.0
    %86 = vmatprep.subr.mxu0 0.0
    %87 = vmatpush1.msra.mxu0 0.0
    %88 = vmatprep.subr.mxu0 0.0
    %89 = vmatpush1.msra.mxu0 0.0
    %90 = vmatprep.subr.mxu0 0.0
    %91 = vmatpush1.msra.mxu0 0.0
    %92 = vmatprep.subr.mxu0 0.0
    %93 = vmatpush1.msra.mxu0 0.0
    %94 = vmatprep.subr.mxu0 0.0
    %95 = vmatpush1.msra.mxu0 0.0
    %96 = vmatprep.subr.mxu0 0.0
    %97 = vmatpush1.msra.mxu0 0.0
    %98 = vmatprep.subr.mxu0 0.0
    %99 = vmatpush1.msra.mxu0 0.0
    %100 = vmatprep.subr.mxu0 0.0
    %101 = vmatpush1.msra.mxu0 0.0
    %102 = vmatprep.subr.mxu0 0.0
    %103 = vmatpush1.msra.mxu0 0.0
    %104 = vmatprep.subr.mxu0 0.0
    %105 = vmatpush1.msra.mxu0 0.0
    %106 = vmatprep.subr.mxu0 0.0
    %107 = vmatpush1.msra.mxu0 0.0
    %108 = vmatprep.subr.mxu0 0.0
    %109 = vmatpush1.msra.mxu0 0.0
    %110 = vmatprep.mubr.f32.mxu0 0.0
    %111 = vmatmul.mubr.f32.gmra.mrb[0].mxu0 %v40
    %v112 = vpop.f32.mrb[0].mxu0
    %v113 = vadd.f32 0.0, %v112
    %v114 = vpop.f32.mrb[0].mxu0
    %115 = vdwg.mxu0
    %vm116 = vcmask 130048
    %v118 = vsel %vm116, %v33, 0
    %120 = vmatprep.subr.mxu0 0.0
    %121 = vmatpush1.msra.mxu0 %v34
    %122 = vmatprep.subr.mxu0 0.0
    %123 = vmatpush1.msra.mxu0 %v35
    %124 = vmatprep.subr.mxu0 0.0
    %125 = vmatpush1.msra.mxu0 0.0
    %126 = vmatprep.subr.mxu0 0.0
    %127 = vmatpush1.msra.mxu0 0.0
    %128 = vmatprep.subr.mxu0 0.0
    %129 = vmatpush1.msra.mxu0 0.0
    %130 = vmatprep.subr.mxu0 0.0
    %131 = vmatpush1.msra.mxu0 0.0
    %132 = vmatprep.subr.mxu0 0.0
    %133 = vmatpush1.msra.mxu0 0.0
    %134 = vmatprep.subr.mxu0 0.0
    %135 = vmatpush1.msra.mxu0 0.0
    %136 = vmatprep.subr.mxu0 0.0
    %137 = vmatpush1.msra.mxu0 0.0
    %138 = vmatprep.subr.mxu0 0.0
    %139 = vmatpush1.msra.mxu0 0.0
    %140 = vmatprep.subr.mxu0 0.0
    %141 = vmatpush1.msra.mxu0 0.0
    %142 = vmatprep.subr.mxu0 0.0
    %143 = vmatpush1.msra.mxu0 0.0
    %144 = vmatprep.subr.mxu0 0.0
    %145 = vmatpush1.msra.mxu0 0.0
    %146 = vmatprep.subr.mxu0 0.0
    %147 = vmatpush1.msra.mxu0 0.0
    %148 = vmatprep.subr.mxu0 0.0
    %149 = vmatpush1.msra.mxu0 0.0
    %150 = vmatprep.subr.mxu0 0.0
    %151 = vmatpush1.msra.mxu0 0.0
    %152 = vmatprep.subr.mxu0 0.0
    %153 = vmatpush1.msra.mxu0 0.0
    %154 = vmatprep.subr.mxu0 0.0
    %155 = vmatpush1.msra.mxu0 0.0
    %156 = vmatprep.subr.mxu0 0.0
    %157 = vmatpush1.msra.mxu0 0.0
    %158 = vmatprep.subr.mxu0 0.0
    %159 = vmatpush1.msra.mxu0 0.0
    %160 = vmatprep.subr.mxu0 0.0
    %161 = vmatpush1.msra.mxu0 0.0
    %162 = vmatprep.subr.mxu0 0.0
    %163 = vmatpush1.msra.mxu0 0.0
    %164 = vmatprep.subr.mxu0 0.0
    %165 = vmatpush1.msra.mxu0 0.0
    %166 = vmatprep.subr.mxu0 0.0
    %167 = vmatpush1.msra.mxu0 0.0
    %168 = vmatprep.subr.mxu0 0.0
    %169 = vmatpush1.msra.mxu0 0.0
    %170 = vmatprep.subr.mxu0 0.0
    %171 = vmatpush1.msra.mxu0 0.0
    %172 = vmatprep.subr.mxu0 0.0
    %173 = vmatpush1.msra.mxu0 0.0
    %174 = vmatprep.subr.mxu0 0.0
    %175 = vmatpush1.msra.mxu0 0.0
    %176 = vmatprep.subr.mxu0 0.0
    %177 = vmatpush1.msra.mxu0 0.0
    %178 = vmatprep.subr.mxu0 0.0
    %179 = vmatpush1.msra.mxu0 0.0
    %180 = vmatprep.subr.mxu0 0.0
    %181 = vmatpush1.msra.mxu0 0.0
    %182 = vmatprep.subr.mxu0 0.0
    %183 = vmatpush1.msra.mxu0 0.0
    %184 = vmatprep.mubr.f32.mxu0 0.0
    %185 = vmatmul.mubr.f32.gmra.mrb[0].mxu0 %v118
    %v186 = vpop.f32.mrb[0].mxu0
    %v187 = vadd.f32 %v113, %v186
    %v188 = vpop.f32.mrb[0].mxu0
    %189 = vdwg.mxu0
    %v190 = vld [vmem:[%s4] sm:$0x1]
    %v192 = vlaneseq
    %v193 = vshrl.u32 %v192, 7
    %v194 = vsub.s32 0, %v193
    %v195 = vrot.slane %v190, %v194
    %v197 = vadd.f32 %v187, %v195
    %v198 = vmax.f32 %v197, 0.0
    %v199 = vld [vmem:[%s5] sm:$0xff]
    %v200 = vld [vmem:[%s5 + $0x8] sm:$0xff]
    %v201 = vld [vmem:[%s5 + $0x10] sm:$0xff]
    %v202 = vld [vmem:[%s5 + $0x18] sm:$0xff]
    %v203 = vld [vmem:[%s6] sm:$0x1]
    %v205 = vlaneseq
    %v206 = vshrl.u32 %v205, 7
    %v207 = vsub.s32 0, %v206
    %v208 = vrot.slane %v203, %v207
    %vm210 = vcmask 261120
    %v212 = vsel %vm210, %v198, 0
    %214 = vmatprep.subr.mxu0 0.0
    %215 = vmatpush1.msra.mxu0 %v199
    %216 = vmatprep.subr.mxu0 0.0
    %217 = vmatpush1.msra.mxu0 %v200
    %218 = vmatprep.subr.mxu0 0.0
    %219 = vmatpush1.msra.mxu0 %v201
    %220 = vmatprep.subr.mxu0 0.0
    %221 = vmatpush1.msra.mxu0 %v202
    %222 = vmatprep.subr.mxu0 0.0
    %223 = vmatpush1.msra.mxu0 0.0
    %224 = vmatprep.subr.mxu0 0.0
    %225 = vmatpush1.msra.mxu0 0.0
    %226 = vmatprep.subr.mxu0 0.0
    %227 = vmatpush1.msra.mxu0 0.0
    %228 = vmatprep.subr.mxu0 0.0
    %229 = vmatpush1.msra.mxu0 0.0
    %230 = vmatprep.subr.mxu0 0.0
    %231 = vmatpush1.msra.mxu0 0.0
    %232 = vmatprep.subr.mxu0 0.0
    %233 = vmatpush1.msra.mxu0 0.0
    %234 = vmatprep.subr.mxu0 0.0
    %235 = vmatpush1.msra.mxu0 0.0
    %236 = vmatprep.subr.mxu0 0.0
    %237 = vmatpush1.msra.mxu0 0.0
    %238 = vmatprep.subr.mxu0 0.0
    %239 = vmatpush1.msra.mxu0 0.0
    %240 = vmatprep.subr.mxu0 0.0
    %241 = vmatpush1.msra.mxu0 0.0
    %242 = vmatprep.subr.mxu0 0.0
    %243 = vmatpush1.msra.mxu0 0.0
    %244 = vmatprep.subr.mxu0 0.0
    %245 = vmatpush1.msra.mxu0 0.0
    %246 = vmatprep.subr.mxu0 0.0
    %247 = vmatpush1.msra.mxu0 0.0
    %248 = vmatprep.subr.mxu0 0.0
    %249 = vmatpush1.msra.mxu0 0.0
    %250 = vmatprep.subr.mxu0 0.0
    %251 = vmatpush1.msra.mxu0 0.0
    %252 = vmatprep.subr.mxu0 0.0
    %253 = vmatpush1.msra.mxu0 0.0
    %254 = vmatprep.subr.mxu0 0.0
    %255 = vmatpush1.msra.mxu0 0.0
    %256 = vmatprep.subr.mxu0 0.0
    %257 = vmatpush1.msra.mxu0 0.0
    %258 = vmatprep.subr.mxu0 0.0
    %259 = vmatpush1.msra.mxu0 0.0
    %260 = vmatprep.subr.mxu0 0.0
    %261 = vmatpush1.msra.mxu0 0.0
    %262 = vmatprep.subr.mxu0 0.0
    %263 = vmatpush1.msra.mxu0 0.0
    %264 = vmatprep.subr.mxu0 0.0
    %265 = vmatpush1.msra.mxu0 0.0
    %266 = vmatprep.subr.mxu0 0.0
    %267 = vmatpush1.msra.mxu0 0.0
    %268 = vmatprep.subr.mxu0 0.0
    %269 = vmatpush1.msra.mxu0 0.0
    %270 = vmatprep.subr.mxu0 0.0
    %271 = vmatpush1.msra.mxu0 0.0
    %272 = vmatprep.subr.mxu0 0.0
    %273 = vmatpush1.msra.mxu0 0.0
    %274 = vmatprep.subr.mxu0 0.0
    %275 = vmatpush1.msra.mxu0 0.0
    %276 = vmatprep.subr.mxu0 0.0
    %277 = vmatpush1.msra.mxu0 0.0
    %278 = vmatprep.mubr.f32.mxu0 0.0
    %279 = vmatmul.mubr.f32.gmra.mrb[0].mxu0 %v212
    %v280 = vpop.f32.mrb[0].mxu0
    %v281 = vadd.f32 %v208, %v280
    %v282 = vpop.f32.mrb[0].mxu0
    %283 = vdwg.mxu0
    %v284 = vmax.f32 %v281, 0.0
    %v285 = vld [vmem:[%s7] sm:$0xff]
    %v286 = vld [vmem:[%s7 + $0x8] sm:$0xff]
    %v287 = vld [vmem:[%s7 + $0x10] sm:$0xff]
    %v288 = vld [vmem:[%s7 + $0x18] sm:$0xff]
    %v289 = vld [vmem:[%s8] sm:$0x1]
    %v291 = vlaneseq
    %v292 = vshrl.u32 %v291, 7
    %v293 = vsub.s32 0, %v292
    %v294 = vrot.slane %v289, %v293
    %v297 = vsel %vm210, %v284, 0
    %299 = vmatprep.subr.mxu0 0.0
    %300 = vmatpush1.msra.mxu0 %v285
    %301 = vmatprep.subr.mxu0 0.0
    %302 = vmatpush1.msra.mxu0 %v286
    %303 = vmatprep.subr.mxu0 0.0
    %304 = vmatpush1.msra.mxu0 %v287
    %305 = vmatprep.subr.mxu0 0.0
    %306 = vmatpush1.msra.mxu0 %v288
    %307 = vmatprep.subr.mxu0 0.0
    %308 = vmatpush1.msra.mxu0 0.0
    %309 = vmatprep.subr.mxu0 0.0
    %310 = vmatpush1.msra.mxu0 0.0
    %311 = vmatprep.subr.mxu0 0.0
    %312 = vmatpush1.msra.mxu0 0.0
    %313 = vmatprep.subr.mxu0 0.0
    %314 = vmatpush1.msra.mxu0 0.0
    %315 = vmatprep.subr.mxu0 0.0
    %316 = vmatpush1.msra.mxu0 0.0
    %317 = vmatprep.subr.mxu0 0.0
    %318 = vmatpush1.msra.mxu0 0.0
    %319 = vmatprep.subr.mxu0 0.0
    %320 = vmatpush1.msra.mxu0 0.0
    %321 = vmatprep.subr.mxu0 0.0
    %322 = vmatpush1.msra.mxu0 0.0
    %323 = vmatprep.subr.mxu0 0.0
    %324 = vmatpush1.msra.mxu0 0.0
    %325 = vmatprep.subr.mxu0 0.0
    %326 = vmatpush1.msra.mxu0 0.0
    %327 = vmatprep.subr.mxu0 0.0
    %328 = vmatpush1.msra.mxu0 0.0
    %329 = vmatprep.subr.mxu0 0.0
    %330 = vmatpush1.msra.mxu0 0.0
    %331 = vmatprep.subr.mxu0 0.0
    %332 = vmatpush1.msra.mxu0 0.0
    %333 = vmatprep.subr.mxu0 0.0
    %334 = vmatpush1.msra.mxu0 0.0
    %335 = vmatprep.subr.mxu0 0.0
    %336 = vmatpush1.msra.mxu0 0.0
    %337 = vmatprep.subr.mxu0 0.0
    %338 = vmatpush1.msra.mxu0 0.0
    %339 = vmatprep.subr.mxu0 0.0
    %340 = vmatpush1.msra.mxu0 0.0
    %341 = vmatprep.subr.mxu0 0.0
    %342 = vmatpush1.msra.mxu0 0.0
    %343 = vmatprep.subr.mxu0 0.0
    %344 = vmatpush1.msra.mxu0 0.0
    %345 = vmatprep.subr.mxu0 0.0
    %346 = vmatpush1.msra.mxu0 0.0
    %347 = vmatprep.subr.mxu0 0.0
    %348 = vmatpush1.msra.mxu0 0.0
    %349 = vmatprep.subr.mxu0 0.0
    %350 = vmatpush1.msra.mxu0 0.0
    %351 = vmatprep.subr.mxu0 0.0
    %352 = vmatpush1.msra.mxu0 0.0
    %353 = vmatprep.subr.mxu0 0.0
    %354 = vmatpush1.msra.mxu0 0.0
    %355 = vmatprep.subr.mxu0 0.0
    %356 = vmatpush1.msra.mxu0 0.0
    %357 = vmatprep.subr.mxu0 0.0
    %358 = vmatpush1.msra.mxu0 0.0
    %359 = vmatprep.subr.mxu0 0.0
    %360 = vmatpush1.msra.mxu0 0.0
    %361 = vmatprep.subr.mxu0 0.0
    %362 = vmatpush1.msra.mxu0 0.0
    %363 = vmatprep.mubr.f32.mxu0 0.0
    %364 = vmatmul.mubr.f32.gmra.mrb[0].mxu0 %v297
    %v365 = vpop.f32.mrb[0].mxu0
    %v366 = vadd.f32 %v294, %v365
    %v367 = vpop.f32.mrb[0].mxu0
    %368 = vdwg.mxu0
    %369 = vst.msk [vmem:[#allocation2] sm:$0xff] %vm116, %v366
    // Predicated region
    $region38: #{tpu_custom_call.1} parent=1 // pred_check
      _
    $region39: #{tpu_custom_call.1} parent=1 // pred_check_branch
      %371 = sbr.rel (0) target = $region41
    $region40: #{tpu_custom_call.1} parent=1 // pred_region
      %s373 = ssub.s32 128, 128
      %374 = vsyncadd [#allocation3], %s373
      %s376 = sshll.u32 [#allocation2], 4
      %s377 = int_to_ptr.vmem [resolvable:$true] %s376
      %379 = dma.vmem_to_hbm [thread:$0]  %s377, 128, %s9, [#allocation3]
    $region41: #{tpu_custom_call.1} parent=1 // pred_fallthru
      _
    // Predicated region
    $region42: #{tpu_custom_call.1} parent=1 // pred_check
      _
    $region43: #{tpu_custom_call.1} parent=1 // pred_check_branch
      %381 = sbr.rel (0) target = $region45
    $region44: #{tpu_custom_call.1} parent=1 // pred_region
      %382 = dma.done [#allocation3], 128
    $region45: #{tpu_custom_call.1} parent=1 // pred_fallthru
      _
    %383 = vsyncpa [#allocation3], 1

</llo_original>
